<compile_context>
chip_gen: v7x
topology: tpu7x:2x2x1
jax: 0.10.0
libtpu: 0.0.40
codegen_flags: <defaults>
</compile_context>

<pallas_src>
import functools
import math

import jax
import jax.numpy as jnp
from jax.experimental import pallas as pl
from jax.experimental.pallas import tpu as pltpu


_LANE_W = 128                           # every block is (r_tile, 128): dense vregs
_TARGET_BLOCK_BYTES = 2 * 1024 * 1024   # per-input HBM->VMEM block (widest dtype)
_VMEM_LIMIT_BYTES = 32 * 1024 * 1024    # == v7x scoped default; raises v5e's 16 MiB


def _cdiv(a, b):
    return -(-a // b)


def _sublane_multiple(dtype):
    """Packed-sublane count: f32 -> 8, bf16 -> 16, int8/bool -> 32."""
    itemsize = jnp.dtype(dtype).itemsize
    return max(8, 8 * (4 // max(itemsize, 1)))


def _dice_partial_kernel(pred_ref, tgt_ref, inter_ref, denom_ref, *,
                         k_per, r_tile, n_valid, needs_mask):
    """One (r_tile, 128) tile of one sample -> lane-parallel partial sums.

    inter_ref / denom_ref are (1, 128) per-(sample, split) accumulators that
    stay resident across the row-tile (reduction) grid axis.
    """
    s = pl.program_id(1)   # reduction-split index (megacore for odd/unit batch)
    k = pl.program_id(2)   # row-tile index within the split

    @pl.when(k == 0)
    def _init():
        inter_ref[...] = jnp.zeros_like(inter_ref)
        denom_ref[...] = jnp.zeros_like(denom_ref)

    p = jax.nn.sigmoid(pred_ref[...].astype(jnp.float32))
    t = tgt_ref[...].astype(jnp.float32)

    if needs_mask:
        # Tail handling fully in-kernel: elements whose flat per-sample index
        # is >= n_valid (partial last row-tile, duplicated split tiles, or the
        # 128-alignment pad) are zeroed before the sums.  jnp.where also kills
        # any NaN/Inf garbage read from the out-of-bounds block region.
        tile = s * k_per + k                       # logical (unclamped) tile idx
        row = jax.lax.broadcasted_iota(jnp.int32, p.shape, 0)
        col = jax.lax.broadcasted_iota(jnp.int32, p.shape, 1)
        idx = (tile * r_tile + row) * _LANE_W + col
        valid = idx < n_valid
        p = jnp.where(valid, p, 0.0)
        t = jnp.where(valid, t, 0.0)

    # Lane-parallel partial sums (VALU row folds + one sublane reduce per tile);
    # the final cross-lane reduce happens once in the wrapper.
    # Note sum(p) + sum(t) == sum(p + t): one reduction for the denominator.
    inter_ref[...] += jnp.sum(p * t, axis=0, keepdims=True)
    denom_ref[...] += jnp.sum(p + t, axis=0, keepdims=True)


def binary_segmentation_loss(pred, target, smooth=1.0, *,
                             max_block_bytes=_TARGET_BLOCK_BYTES):
    """Dice loss with sigmoid activation.  pred/target: (B, C, H, W) NCHW."""
    assert pred.shape == target.shape, (pred.shape, target.shape)
    B = pred.shape[0]
    N = math.prod(pred.shape[1:])

    # Per-sample flatten (metadata-only reshape, no copy).
    pred_f = pred.reshape(B, N)
    tgt_f = target.reshape(B, N)

    n128 = _cdiv(N, _LANE_W) * _LANE_W
    if n128 != N:
        # Rare ragged case: the (B, rows, 128) view does not exist without a
        # minimal zero-pad to the next lane multiple.  Padded elements are
        # masked in the kernel (no sigmoid(-1e9) trick), so pad value is 0.
        pred_f = jnp.pad(pred_f, ((0, 0), (0, n128 - N)))
        tgt_f = jnp.pad(tgt_f, ((0, 0), (0, n128 - N)))
    rows = n128 // _LANE_W
    pred_3d = pred_f.reshape(B, rows, _LANE_W)   # free reshape
    tgt_3d = tgt_f.reshape(B, rows, _LANE_W)

    # ---- tiling: byte-based block cap, dtype-native sublane rounding -------
    sub = max(_sublane_multiple(pred.dtype), _sublane_multiple(target.dtype))
    widest = max(jnp.dtype(pred.dtype).itemsize, jnp.dtype(target.dtype).itemsize)
    cap_rows = max(sub, (max_block_bytes // widest // _LANE_W) // sub * sub)
    if rows <= cap_rows:
        r_tile = rows                 # single full-extent block per sample
        n_k_total = 1
    else:
        r_tile = cap_rows             # multiple of the packed-sublane count
        n_k_total = _cdiv(rows, r_tile)

    # v7x megacore: with an odd/unit batch the batch-"parallel" axis alone
    # leaves a TensorCore idle / imbalanced; split the row-tile range into two
    # parallel halves and sum the per-split partials in the wrapper.
    # Harmless (a couple of extra tiny init/store steps) on 1-TC chips.
    n_splits = 2 if (B % 2 == 1 and n_k_total >= 2) else 1
    k_per = _cdiv(n_k_total, n_splits)

    coverage = n_splits * k_per * r_tile * _LANE_W   # elements visited / sample
    needs_mask = coverage != N

    def in_index(b, s, k):
        kk = s * k_per + k
        if n_splits > 1:              # clamp duplicate tail tiles (fully masked)
            kk = jnp.minimum(kk, n_k_total - 1)
        return (b, kk, 0)

    def out_index(b, s, k):
        return (b, s, 0, 0)

    kernel = functools.partial(
        _dice_partial_kernel,
        k_per=k_per, r_tile=r_tile, n_valid=N, needs_mask=needs_mask)

    in_bytes = (pred_3d.size * pred_3d.dtype.itemsize
                + tgt_3d.size * tgt_3d.dtype.itemsize)
    out_bytes = 2 * B * n_splits * _LANE_W * 4
    cost = pl.CostEstimate(
        flops=6 * B * coverage,
        transcendentals=B * coverage,
        bytes_accessed=in_bytes + out_bytes,
    )

    inter, denom = pl.pallas_call(
        kernel,
        out_shape=(
            jax.ShapeDtypeStruct((B, n_splits, 1, _LANE_W), jnp.float32),
            jax.ShapeDtypeStruct((B, n_splits, 1, _LANE_W), jnp.float32),
        ),
        grid_spec=pltpu.PrefetchScalarGridSpec(
            num_scalar_prefetch=0,
            grid=(B, n_splits, k_per),
            in_specs=[
                pl.BlockSpec((None, r_tile, _LANE_W), in_index),
                pl.BlockSpec((None, r_tile, _LANE_W), in_index),
            ],
            out_specs=[
                pl.BlockSpec((None, None, 1, _LANE_W), out_index),
                pl.BlockSpec((None, None, 1, _LANE_W), out_index),
            ],
        ),
        compiler_params=pltpu.CompilerParams(
            dimension_semantics=("parallel", "parallel", "arbitrary"),
            vmem_limit_bytes=_VMEM_LIMIT_BYTES,
        ),
        cost_estimate=cost,
    )(pred_3d, tgt_3d)

    # Tiny finalize in plain JAX: split + lane reduce, then the Dice ratio.
    inter = jnp.sum(inter, axis=(1, 2, 3))      # (B,)
    denom = jnp.sum(denom, axis=(1, 2, 3))      # (B,)
    dice = (2.0 * inter + smooth) / (denom + smooth)
    return 1.0 - jnp.mean(dice)


def _reference_loss(pred, target, smooth=1.0):
    p = jax.nn.sigmoid(pred.astype(jnp.float32)).reshape(pred.shape[0], -1)
    t = target.astype(jnp.float32).reshape(target.shape[0], -1)
    inter = jnp.sum(p * t, axis=-1)
    dice = (2.0 * inter + smooth) / (jnp.sum(p, -1) + jnp.sum(t, -1) + smooth)
    return 1.0 - jnp.mean(dice)


if __name__ == "__main__":
    key = jax.random.PRNGKey(0)
    keys = jax.random.split(key, 4)

    # 1) Canonical small shape: B=2, C=4, H=W=16 (NCHW logits, binary mask).
    #    N=4096 -> rows=32 <= cap -> single full-extent block, no masking.
    B, C, H, W = 2, 4, 16, 16
    pred = jax.random.normal(keys[0], (B, C, H, W), dtype=jnp.float32)
    target = (jax.random.uniform(keys[1], (B, C, H, W)) > 0.5).astype(jnp.float32)
    loss = binary_segmentation_loss(pred, target, smooth=1.0)
    jax.block_until_ready(loss)
    ref = _reference_loss(pred, target, smooth=1.0)
    assert jnp.allclose(loss, ref, atol=1e-5, rtol=1e-5), (loss, ref)

    # 2) Low-precision streaming inputs (bf16 logits, int8 mask): kernel casts
    #    to f32 internally; byte-based cap sizes blocks by the widest dtype.
    loss_lp = binary_segmentation_loss(pred.astype(jnp.bfloat16),
                                       target.astype(jnp.int8), smooth=1.0)
    jax.block_until_ready(loss_lp)
    ref_lp = _reference_loss(pred.astype(jnp.bfloat16),
                             target.astype(jnp.int8), smooth=1.0)
    assert jnp.allclose(loss_lp, ref_lp, atol=1e-4, rtol=1e-4), (loss_lp, ref_lp)

    # 3) Multi-tile path with in-kernel row-tail masking (no wrapper pad):
    #    force small blocks so 32 rows tile as 24 + 8-valid-of-24 (masked).
    loss_mt = binary_segmentation_loss(pred, target, smooth=1.0,
                                       max_block_bytes=12 * 1024)
    jax.block_until_ready(loss_mt)
    assert jnp.allclose(loss_mt, ref, atol=1e-5, rtol=1e-5), (loss_mt, ref)

    # 4) Ragged N (5*21*21 = 2205, not a multiple of 128) + unit batch:
    #    exercises the minimal 128-pad, element-level masking, the 2-way
    #    reduction split, and the clamped (fully-masked) duplicate tail tile.
    pred_r = jax.random.normal(keys[2], (1, 5, 21, 21), dtype=jnp.float32)
    tgt_r = (jax.random.uniform(keys[3], (1, 5, 21, 21)) > 0.5).astype(jnp.float32)
    loss_r = binary_segmentation_loss(pred_r, tgt_r, smooth=1.0,
                                      max_block_bytes=2048)
    jax.block_until_ready(loss_r)
    ref_r = _reference_loss(pred_r, tgt_r, smooth=1.0)
    assert jnp.allclose(loss_r, ref_r, atol=1e-5, rtol=1e-5), (loss_r, ref_r)

    print("KERNEL_OK")
</pallas_src>

<mosaic_0001>
module attributes {stable_mosaic.version = 11 : i64} {
  func.func @_dice_partial_kernel(%arg0: i32, %arg1: i32, %arg2: i32, %arg3: memref<1x8x128xf32, #tpu.memory_space<vmem>>, %arg4: memref<1x8x128xf32, #tpu.memory_space<vmem>>, %arg5: memref<1x1x1x128xf32, #tpu.memory_space<vmem>>, %arg6: memref<1x1x1x128xf32, #tpu.memory_space<vmem>>) attributes {dimension_semantics = [#tpu.dimension_semantics<parallel>, #tpu.dimension_semantics<parallel>, #tpu.dimension_semantics<arbitrary>], iteration_bounds = array<i64: 2, 1, 1>, scalar_prefetch = 0 : i64, scratch_operands = 0 : i64, tpu.core_type = #tpu.core_type<tc>, window_params = [{transform_indices = @transform_0, window_bounds = array<i64: 1, 8, 128>}, {transform_indices = @transform_1, window_bounds = array<i64: 1, 8, 128>}, {transform_indices = @transform_2, window_bounds = array<i64: 1, 1, 1, 128>}, {transform_indices = @transform_3, window_bounds = array<i64: 1, 1, 1, 128>}]} {
    %c0_i32 = arith.constant 0 : i32
    %0 = arith.cmpi eq, %arg2, %c0_i32 : i32
    %1 = arith.extui %0 : i1 to i32
    %c0_i32_0 = arith.constant 0 : i32
    %2 = arith.cmpi ne, %1, %c0_i32_0 : i32
    scf.if %2 {
      %cst_24 = arith.constant 0.000000e+00 : f32
      %30 = vector.broadcast %cst_24 : f32 to vector<1x128xf32>
      %c0_25 = arith.constant 0 : index
      %c0_26 = arith.constant 0 : index
      %c0_27 = arith.constant 0 : index
      %c0_28 = arith.constant 0 : index
      %31 = vector.load %arg5[%c0_25, %c0_26, %c0_27, %c0_28] : memref<1x1x1x128xf32, #tpu.memory_space<vmem>>, vector<1x1x1x128xf32>
      %32 = vector.shape_cast %31 : vector<1x1x1x128xf32> to vector<1x128xf32>
      %33 = vector.shape_cast %30 : vector<1x128xf32> to vector<1x1x1x128xf32>
      tpu.vector_store %arg5[%c0_25, %c0_26, %c0_27, %c0_28], %33 {strides = array<i32>} : memref<1x1x1x128xf32, #tpu.memory_space<vmem>>, vector<1x1x1x128xf32>,
      %cst_29 = arith.constant 0.000000e+00 : f32
      %34 = vector.broadcast %cst_29 : f32 to vector<1x128xf32>
      %c0_30 = arith.constant 0 : index
      %c0_31 = arith.constant 0 : index
      %c0_32 = arith.constant 0 : index
      %c0_33 = arith.constant 0 : index
      %35 = vector.load %arg6[%c0_30, %c0_31, %c0_32, %c0_33] : memref<1x1x1x128xf32, #tpu.memory_space<vmem>>, vector<1x1x1x128xf32>
      %36 = vector.shape_cast %35 : vector<1x1x1x128xf32> to vector<1x128xf32>
      %37 = vector.shape_cast %34 : vector<1x128xf32> to vector<1x1x1x128xf32>
      tpu.vector_store %arg6[%c0_30, %c0_31, %c0_32, %c0_33], %37 {strides = array<i32>} : memref<1x1x1x128xf32, #tpu.memory_space<vmem>>, vector<1x1x1x128xf32>,
    } else {
    }
    %c0 = arith.constant 0 : index
    %c0_1 = arith.constant 0 : index
    %c0_2 = arith.constant 0 : index
    %3 = vector.load %arg3[%c0, %c0_1, %c0_2] : memref<1x8x128xf32, #tpu.memory_space<vmem>>, vector<1x8x128xf32>
    %4 = vector.shape_cast %3 : vector<1x8x128xf32> to vector<8x128xf32>
    %5 = arith.negf %4 : vector<8x128xf32>
    %6 = math.exp %5 : vector<8x128xf32>
    %cst = arith.constant 1.000000e+00 : f32
    %7 = vector.broadcast %cst : f32 to vector<8x128xf32>
    %8 = arith.addf %7, %6 : vector<8x128xf32>
    %9 = arith.divf %7, %8 : vector<8x128xf32>
    %c0_3 = arith.constant 0 : index
    %c0_4 = arith.constant 0 : index
    %c0_5 = arith.constant 0 : index
    %10 = vector.load %arg4[%c0_3, %c0_4, %c0_5] : memref<1x8x128xf32, #tpu.memory_space<vmem>>, vector<1x8x128xf32>
    %11 = vector.shape_cast %10 : vector<1x8x128xf32> to vector<8x128xf32>
    %c0_6 = arith.constant 0 : index
    %c0_7 = arith.constant 0 : index
    %c0_8 = arith.constant 0 : index
    %c0_9 = arith.constant 0 : index
    %12 = vector.load %arg5[%c0_6, %c0_7, %c0_8, %c0_9] : memref<1x1x1x128xf32, #tpu.memory_space<vmem>>, vector<1x1x1x128xf32>
    %13 = vector.shape_cast %12 : vector<1x1x1x128xf32> to vector<1x128xf32>
    %14 = arith.mulf %9, %11 : vector<8x128xf32>
    %cst_10 = arith.constant dense<0.000000e+00> : vector<128xf32>
    %15 = vector.multi_reduction <add>, %14, %cst_10 [0] : vector<8x128xf32> to vector<128xf32>
    %16 = vector.shape_cast %15 : vector<128xf32> to vector<1x128xf32>
    %17 = arith.addf %13, %16 : vector<1x128xf32>
    %c0_11 = arith.constant 0 : index
    %c0_12 = arith.constant 0 : index
    %c0_13 = arith.constant 0 : index
    %c0_14 = arith.constant 0 : index
    %18 = vector.load %arg5[%c0_11, %c0_12, %c0_13, %c0_14] : memref<1x1x1x128xf32, #tpu.memory_space<vmem>>, vector<1x1x1x128xf32>
    %19 = vector.shape_cast %18 : vector<1x1x1x128xf32> to vector<1x128xf32>
    %20 = vector.shape_cast %17 : vector<1x128xf32> to vector<1x1x1x128xf32>
    tpu.vector_store %arg5[%c0_11, %c0_12, %c0_13, %c0_14], %20 {strides = array<i32>} : memref<1x1x1x128xf32, #tpu.memory_space<vmem>>, vector<1x1x1x128xf32>,
    %c0_15 = arith.constant 0 : index
    %c0_16 = arith.constant 0 : index
    %c0_17 = arith.constant 0 : index
    %c0_18 = arith.constant 0 : index
    %21 = vector.load %arg6[%c0_15, %c0_16, %c0_17, %c0_18] : memref<1x1x1x128xf32, #tpu.memory_space<vmem>>, vector<1x1x1x128xf32>
    %22 = vector.shape_cast %21 : vector<1x1x1x128xf32> to vector<1x128xf32>
    %23 = arith.addf %9, %11 : vector<8x128xf32>
    %cst_19 = arith.constant dense<0.000000e+00> : vector<128xf32>
    %24 = vector.multi_reduction <add>, %23, %cst_19 [0] : vector<8x128xf32> to vector<128xf32>
    %25 = vector.shape_cast %24 : vector<128xf32> to vector<1x128xf32>
    %26 = arith.addf %22, %25 : vector<1x128xf32>
    %c0_20 = arith.constant 0 : index
    %c0_21 = arith.constant 0 : index
    %c0_22 = arith.constant 0 : index
    %c0_23 = arith.constant 0 : index
    %27 = vector.load %arg6[%c0_20, %c0_21, %c0_22, %c0_23] : memref<1x1x1x128xf32, #tpu.memory_space<vmem>>, vector<1x1x1x128xf32>
    %28 = vector.shape_cast %27 : vector<1x1x1x128xf32> to vector<1x128xf32>
    %29 = vector.shape_cast %26 : vector<1x128xf32> to vector<1x1x1x128xf32>
    tpu.vector_store %arg6[%c0_20, %c0_21, %c0_22, %c0_23], %29 {strides = array<i32>} : memref<1x1x1x128xf32, #tpu.memory_space<vmem>>, vector<1x1x1x128xf32>,
    return
  }
  func.func @transform_0(%arg0: i32, %arg1: i32, %arg2: i32) -> (i32, i32, i32) {
    %c1_i32 = arith.constant 1 : i32
    %0 = arith.muli %arg1, %c1_i32 : i32
    %1 = arith.addi %0, %arg2 : i32
    %c0_i32 = arith.constant 0 : i32
    %c0_i32_0 = arith.constant 0 : i32
    return %arg0, %1, %c0_i32 : i32, i32, i32
  }
  func.func @transform_1(%arg0: i32, %arg1: i32, %arg2: i32) -> (i32, i32, i32) {
    %c1_i32 = arith.constant 1 : i32
    %0 = arith.muli %arg1, %c1_i32 : i32
    %1 = arith.addi %0, %arg2 : i32
    %c0_i32 = arith.constant 0 : i32
    %c0_i32_0 = arith.constant 0 : i32
    return %arg0, %1, %c0_i32 : i32, i32, i32
  }
  func.func @transform_2(%arg0: i32, %arg1: i32, %arg2: i32) -> (i32, i32, i32, i32) {
    %c0_i32 = arith.constant 0 : i32
    %c0_i32_0 = arith.constant 0 : i32
    %c0_i32_1 = arith.constant 0 : i32
    return %arg0, %arg1, %c0_i32, %c0_i32_0 : i32, i32, i32, i32
  }
  func.func @transform_3(%arg0: i32, %arg1: i32, %arg2: i32) -> (i32, i32, i32, i32) {
    %c0_i32 = arith.constant 0 : i32
    %c0_i32_0 = arith.constant 0 : i32
    %c0_i32_1 = arith.constant 0 : i32
    return %arg0, %arg1, %c0_i32, %c0_i32_0 : i32, i32, i32, i32
  }
}

</mosaic_0001>

<llo_original>
// kernel: tpu_custom_call.1
$region0: #{tpu_custom_call.1}
  #allocation0 [shape = 'u32[]', space=smem, size = 0x4, offset = 0x4, fixed_abs, tag = 'smem constant byte address 0x4 - core index']
  #allocation1 [shape = 'u32[144,128]{1,0:T(1,128)}', space=vmem, size = 0x12000, scoped, tag = 'internal scratch']
  %s0 = inlined_call_operand.hbm [shape: f32[2,8,128], index: 0, kind: input, shape index: {}]
  %s1 = inlined_call_operand.hbm [shape: f32[2,8,128], index: 1, kind: input, shape index: {}]
  %s2 = inlined_call_operand.hbm [shape: f32[2,1,1,128], index: 2, kind: output, shape index: {0}]
  %s3 = inlined_call_operand.hbm [shape: f32[2,1,1,128], index: 3, kind: output, shape index: {1}]
  %4 = xla_tuple %s2, %s3
  %s5 = sld [smem:[#allocation0]]
  $region61: #{tpu_custom_call.1} parent=0
    _
  %s7 = ssub.s32 1, %s5
  %s8 = scalar_select 0, %s7, %s5
  $region1: #{tpu_custom_call.1} parent=0
    #allocation2 [shape = 'u8[8192]{0}', space=vmem, size = 0x2000, scoped, tag = 'input window, operand 0']
    #allocation3 [shape = 's32[2]{0}', space=sflag, size = 0x8, scoped, tag = 'scoped memory for tpu_custom_call.1']
    #allocation4 [shape = 's32[2]{0}', space=sflag, size = 0x8, scoped, tag = 'scoped memory for tpu_custom_call.1']
    #allocation5 [shape = 'u8[8192]{0}', space=vmem, size = 0x2000, scoped, tag = 'input window, operand 1']
    #allocation6 [shape = 's32[2]{0}', space=sflag, size = 0x8, scoped, tag = 'scoped memory for tpu_custom_call.1']
    #allocation7 [shape = 'u8[1024]{0}', space=vmem, size = 0x400, scoped, tag = 'output window, operand 0']
    #allocation8 [shape = 'u8[1024]{0}', space=vmem, size = 0x400, scoped, tag = 'output window, operand 1']
    #allocation9 [shape = 's32[2]{0}', space=sflag, size = 0x8, scoped, tag = 'scoped memory for tpu_custom_call.1']
    %9 = vsyncpa [#allocation3], 0
    %s10 = scalar_lea.sflag [#allocation3], 1
    %11 = vsyncpa %s10, 0
    %12 = vsyncpa [#allocation6], 0
    %s13 = scalar_lea.sflag [#allocation6], 1
    %14 = vsyncpa %s13, 0
    %15 = vsyncpa [#allocation4], 0
    %s16 = scalar_lea.sflag [#allocation4], 1
    %17 = vsyncpa %s16, 0
    %18 = vsyncpa [#allocation9], 0
    %s19 = scalar_lea.sflag [#allocation9], 1
    %20 = vsyncpa %s19, 0
    loop: start=0, step=1, limit=4
    $region2: #{tpu_custom_call.1} parent=1 // loop_pre_header
      _
    $region3: #{tpu_custom_call.1} parent=1 // loop_header
      %s22 = sphi 0, %s26
      %p23 = scmp.ge.s32.totalorder %s22, 4
      %s29 = sphi 0, %s48
      %s30 = sphi 0, %s44
      %s31 = sphi 0, %s40
      %s32 = sphi 0, %s29
      %s33 = sphi 0, %s30
      %s34 = sphi 0, %s31
      %s35 = sphi 0, %s32
      %s36 = sphi 0, %s33
      %s37 = sphi 0, %s34
      %s55 = sphi 0, %s57
      %s58 = sphi 0, %s55
      %s59 = sphi 0, %s58
      %s75 = sphi 0, %s59
      %s85 = sphi 0, %s87
      %s88 = sphi 0, %s85
      %s89 = sphi 0, %s88
      %s105 = sphi 0, %s89
      %s113 = sphi 0, %s115
      %s116 = sphi 0, %s113
      %s117 = sphi 0, %s116
      %s133 = sphi 0, %s117
      %s141 = sphi 0, %s143
      %s144 = sphi 0, %s141
      %s145 = sphi 0, %s144
      %s161 = sphi 0, %s145
    $region4: #{tpu_custom_call.1} parent=1 // loop_header_branch
      %25 = sbr.rel (%p23) target = $region8
    $region5: #{tpu_custom_call.1} parent=1 // loop_body
      %s27 = ssub.s32 %s22, 1
      %s28 = ssub.s32 %s22, 2
      %s38 = sadd.s32 1, %s31
      %p39 = scmp.ge.s32.totalorder %s38, 1
      %s40 = scalar_select %p39, 0, %s38
      %s41 = sadd.s32 1, %s30
      %s42 = scalar_select %p39, %s41, %s30
      %p43 = scmp.ge.s32.totalorder %s42, 1
      %s44 = scalar_select %p43, 0, %s42
      %s45 = sadd.s32 1, %s29
      %s46 = scalar_select %p43, %s45, %s29
      %p47 = scmp.ge.s32.totalorder %s46, 2
      %s48 = scalar_select %p47, 0, %s46
      %s49 = sadd.s32 %s30, %s31
      %s50 = sadd.s32 %s44, %s40
      %s51 = ssub.s32 %s29, %s48
      %s52 = ssub.s32 %s49, %s50
      %s53 = sor.u32 %s51, %s52
      %p54 = scmp.eq.s32.totalorder %s53, 0
      %s56 = sadd.s32 %s55, 1
      %s57 = scalar_select %p54, %s55, %s56
      %p60 = pneg %p54
      %p61 = scmp.eq.s32.totalorder %s22, 1
      %p62 = por %p60, %p61
      %p63 = scmp.ne.s32.totalorder %s55, %s58
      %p64 = scmp.eq.s32.totalorder %s22, 0
      %p65 = por %p63, %p64
      %p66 = scmp.ne.s32.totalorder %s55, %s58
      %p67 = scmp.eq.s32.totalorder %s27, 1
      %p68 = por %p66, %p67
      %p69 = scmp.ne.s32.totalorder %s58, %s59
      %p70 = scmp.eq.s32.totalorder %s27, 0
      %p71 = por %p69, %p70
      %p72 = scmp.ne.s32.totalorder %s58, %s59
      %p73 = scmp.eq.s32.totalorder %s28, 1
      %p74 = por %p72, %p73
      %p76 = scmp.ne.s32.totalorder %s59, %s75
      %p77 = scmp.eq.s32.totalorder %s28, 0
      %p78 = por %p76, %p77
      %s79 = sadd.s32 %s30, %s31
      %s80 = sadd.s32 %s44, %s40
      %s81 = ssub.s32 %s29, %s48
      %s82 = ssub.s32 %s79, %s80
      %s83 = sor.u32 %s81, %s82
      %p84 = scmp.eq.s32.totalorder %s83, 0
      %s86 = sadd.s32 %s85, 1
      %s87 = scalar_select %p84, %s85, %s86
      %p90 = pneg %p84
      %p91 = scmp.eq.s32.totalorder %s22, 1
      %p92 = por %p90, %p91
      %p93 = scmp.ne.s32.totalorder %s85, %s88
      %p94 = scmp.eq.s32.totalorder %s22, 0
      %p95 = por %p93, %p94
      %p96 = scmp.ne.s32.totalorder %s85, %s88
      %p97 = scmp.eq.s32.totalorder %s27, 1
      %p98 = por %p96, %p97
      %p99 = scmp.ne.s32.totalorder %s88, %s89
      %p100 = scmp.eq.s32.totalorder %s27, 0
      %p101 = por %p99, %p100
      %p102 = scmp.ne.s32.totalorder %s88, %s89
      %p103 = scmp.eq.s32.totalorder %s28, 1
      %p104 = por %p102, %p103
      %p106 = scmp.ne.s32.totalorder %s89, %s105
      %p107 = scmp.eq.s32.totalorder %s28, 0
      %p108 = por %p106, %p107
      %s109 = ssub.s32 %s29, %s48
      %s110 = ssub.s32 %s30, %s44
      %s111 = sor.u32 %s109, %s110
      %p112 = scmp.eq.s32.totalorder %s111, 0
      %s114 = sadd.s32 %s113, 1
      %s115 = scalar_select %p112, %s113, %s114
      %p118 = pneg %p112
      %p119 = scmp.eq.s32.totalorder %s22, 1
      %p120 = por %p118, %p119
      %p121 = scmp.ne.s32.totalorder %s113, %s116
      %p122 = scmp.eq.s32.totalorder %s22, 0
      %p123 = por %p121, %p122
      %p124 = scmp.ne.s32.totalorder %s113, %s116
      %p125 = scmp.eq.s32.totalorder %s27, 1
      %p126 = por %p124, %p125
      %p127 = scmp.ne.s32.totalorder %s116, %s117
      %p128 = scmp.eq.s32.totalorder %s27, 0
      %p129 = por %p127, %p128
      %p130 = scmp.ne.s32.totalorder %s116, %s117
      %p131 = scmp.eq.s32.totalorder %s28, 1
      %p132 = por %p130, %p131
      %p134 = scmp.ne.s32.totalorder %s117, %s133
      %p135 = scmp.eq.s32.totalorder %s28, 0
      %p136 = por %p134, %p135
      %s137 = ssub.s32 %s29, %s48
      %s138 = ssub.s32 %s30, %s44
      %s139 = sor.u32 %s137, %s138
      %p140 = scmp.eq.s32.totalorder %s139, 0
      %s142 = sadd.s32 %s141, 1
      %s143 = scalar_select %p140, %s141, %s142
      %p146 = pneg %p140
      %p147 = scmp.eq.s32.totalorder %s22, 1
      %p148 = por %p146, %p147
      %p149 = scmp.ne.s32.totalorder %s141, %s144
      %p150 = scmp.eq.s32.totalorder %s22, 0
      %p151 = por %p149, %p150
      %p152 = scmp.ne.s32.totalorder %s141, %s144
      %p153 = scmp.eq.s32.totalorder %s27, 1
      %p154 = por %p152, %p153
      %p155 = scmp.ne.s32.totalorder %s144, %s145
      %p156 = scmp.eq.s32.totalorder %s27, 0
      %p157 = por %p155, %p156
      %p158 = scmp.ne.s32.totalorder %s144, %s145
      %p159 = scmp.eq.s32.totalorder %s28, 1
      %p160 = por %p158, %p159
      %p162 = scmp.ne.s32.totalorder %s145, %s161
      %p163 = scmp.eq.s32.totalorder %s28, 0
      %p164 = por %p162, %p163
      %p165 = scmp.le.s32.totalorder 1, %s22
      %p166 = scmp.lt.s32.totalorder %s22, 3
      %p167 = pnand %p165, %p166
      %p168 = pneg %p167
      // Predicated region
      $region9: #{tpu_custom_call.1} parent=5 // pred_check
        _
      $region10: #{tpu_custom_call.1} parent=5 // pred_check_branch
        %170 = sbr.rel (%p167) target = $region12
      $region11: #{tpu_custom_call.1} parent=5 // pred_region
        %s171 = ssub.s32 %s22, 1
      $region12: #{tpu_custom_call.1} parent=5 // pred_fallthru
        _
      %p172 = scmp.lt.s32.totalorder %s22, 2
      // Predicated region
      $region13: #{tpu_custom_call.1} parent=5 // pred_check
        %p173 = pneg %p172
      $region14: #{tpu_custom_call.1} parent=5 // pred_check_branch
        %175 = sbr.rel (%p173) target = $region16
      $region15: #{tpu_custom_call.1} parent=5 // pred_region
        // Predicated region
        $region17: #{tpu_custom_call.1} parent=15 // pred_check
          %p176 = pneg %p65
        $region18: #{tpu_custom_call.1} parent=15 // pred_check_branch
          %178 = sbr.rel (%p176) target = $region20
        $region19: #{tpu_custom_call.1} parent=15 // pred_region
          %s179 = sand.u32 %s55, 1
          %s180 = scalar_lea.sflag [#allocation3], %s179
          %s181 = sand.u32 %s55, 1
          %s182 = smul.addr %s181, 8
          %s183 = scalar_lea.vmem [#allocation2], %s182
          %s184 = sadd.s32 %s30, %s31
          %s186 = ssub.s32 128, 128
          %187 = vsyncadd %s180, %s186
          %s188 = sadd.s32 %s184, %s29
          %s189 = smul.addr %s188, 128
          %s190 = scalar_lea.hbm %s0, %s189
          %s192 = sshll.u32 %s183, 4
          %s193 = int_to_ptr.vmem [resolvable:$true] %s192
          %195 = dma.hbm_to_vmem [thread:$0]  %s190, 128, %s193, %s180
        $region20: #{tpu_custom_call.1} parent=15 // pred_fallthru
          _
        // Predicated region
        $region21: #{tpu_custom_call.1} parent=15 // pred_check
          %p196 = pneg %p95
        $region22: #{tpu_custom_call.1} parent=15 // pred_check_branch
          %198 = sbr.rel (%p196) target = $region24
        $region23: #{tpu_custom_call.1} parent=15 // pred_region
          %s199 = sand.u32 %s85, 1
          %s200 = scalar_lea.sflag [#allocation6], %s199
          %s201 = sand.u32 %s85, 1
          %s202 = smul.addr %s201, 8
          %s203 = scalar_lea.vmem [#allocation5], %s202
          %s204 = sadd.s32 %s30, %s31
          %s206 = ssub.s32 128, 128
          %207 = vsyncadd %s200, %s206
          %s208 = sadd.s32 %s204, %s29
          %s209 = smul.addr %s208, 128
          %s210 = scalar_lea.hbm %s1, %s209
          %s212 = sshll.u32 %s203, 4
          %s213 = int_to_ptr.vmem [resolvable:$true] %s212
          %215 = dma.hbm_to_vmem [thread:$0]  %s210, 128, %s213, %s200
        $region24: #{tpu_custom_call.1} parent=15 // pred_fallthru
          _
      $region16: #{tpu_custom_call.1} parent=5 // pred_fallthru
        _
      %p216 = scmp.le.s32.totalorder 1, %s22
      %p217 = scmp.lt.s32.totalorder %s22, 3
      %p218 = pnand %p216, %p217
      %p219 = pneg %p218
      // Predicated region
      $region25: #{tpu_custom_call.1} parent=5 // pred_check
        _
      $region26: #{tpu_custom_call.1} parent=5 // pred_check_branch
        %221 = sbr.rel (%p218) target = $region28
      $region27: #{tpu_custom_call.1} parent=5 // pred_region
        %s222 = ssub.s32 %s22, 1
        %s223 = sand.u32 %s58, 1
        %s224 = scalar_lea.sflag [#allocation3], %s223
        %s225 = sand.u32 %s58, 1
        %s226 = smul.addr %s225, 8
        %s227 = scalar_lea.vmem [#allocation2], %s226
        // Predicated region
        $region29: #{tpu_custom_call.1} parent=27 // pred_check
          %p228 = pneg %p71
        $region30: #{tpu_custom_call.1} parent=27 // pred_check_branch
          %230 = sbr.rel (%p228) target = $region32
        $region31: #{tpu_custom_call.1} parent=27 // pred_region
          %231 = dma.done %s224, 128
        $region32: #{tpu_custom_call.1} parent=27 // pred_fallthru
          _
        %s232 = sand.u32 %s88, 1
        %s233 = scalar_lea.sflag [#allocation6], %s232
        %s234 = sand.u32 %s88, 1
        %s235 = smul.addr %s234, 8
        %s236 = scalar_lea.vmem [#allocation5], %s235
        // Predicated region
        $region33: #{tpu_custom_call.1} parent=27 // pred_check
          %p237 = pneg %p101
        $region34: #{tpu_custom_call.1} parent=27 // pred_check_branch
          %239 = sbr.rel (%p237) target = $region36
        $region35: #{tpu_custom_call.1} parent=27 // pred_region
          %240 = dma.done %s233, 128
        $region36: #{tpu_custom_call.1} parent=27 // pred_fallthru
          _
        %s241 = sand.u32 %s58, 1
        %s242 = scalar_lea.sflag [#allocation3], %s241
        %s243 = sand.u32 %s58, 1
        %s244 = smul.addr %s243, 8
        %s245 = scalar_lea.vmem [#allocation2], %s244
        %p246 = pneg %p71
        %p247 = pneg %p68
        %s248 = sand.u32 %s88, 1
        %s249 = scalar_lea.sflag [#allocation6], %s248
        %s250 = sand.u32 %s88, 1
        %s251 = smul.addr %s250, 8
        %s252 = scalar_lea.vmem [#allocation5], %s251
        %p253 = pneg %p101
        %p254 = pneg %p98
        %p255 = pneg %p129
        %p256 = pneg %p126
        %s257 = sand.u32 %s116, 1
        %s258 = scalar_lea.sflag [#allocation4], %s257
        %s259 = sand.u32 %s116, 1
        %s260 = scalar_lea.vmem [#allocation7], %s259
        %p261 = pneg %p157
        %p262 = pneg %p154
        %s263 = sand.u32 %s144, 1
        %s264 = scalar_lea.sflag [#allocation9], %s263
        %s265 = sand.u32 %s144, 1
        %s266 = scalar_lea.vmem [#allocation8], %s265
        %s267 = sadd.s32 %s33, %s34
        %s268 = sadd.s32 %s33, %s34
        %p269 = scmp.eq.s32.totalorder %s34, 0
        // Predicated region
        $region37: #{tpu_custom_call.1} parent=27 // pred_check
          %p270 = pneg %p269
        $region38: #{tpu_custom_call.1} parent=27 // pred_check_branch
          %272 = sbr.rel (%p270) target = $region40
        $region39: #{tpu_custom_call.1} parent=27 // pred_region
          %273 = vst [vmem:[%s260] sm:$0x1] 0.0
          %274 = vst [vmem:[%s266] sm:$0x1] 0.0
        $region40: #{tpu_custom_call.1} parent=27 // pred_fallthru
          _
        %v275 = vld [vmem:[%s227] sm:$0xff]
        %v276 = vxor.u32 %v275, 2147483648
        %v277 = vmul.f32 %v276, 1.442695
        %v278 = vpow.pop %v277
        %v279 = vadd.f32 %v278, 1.0
        %v280 = vrcp.pop %v279
        %v281 = vmul.f32 1.0, %v280
        %v282 = vld [vmem:[%s236] sm:$0xff]
        %v283 = vld [vmem:[%s260] sm:$0x1]
        %v284 = vmul.f32 %v281, %v282
        %v285 = vrot.slane %v284, 4
        %v286 = vadd.f32 %v284, %v285
        %v287 = vrot.slane %v286, 2
        %v288 = vadd.f32 %v286, %v287
        %v289 = vrot.slane %v288, 1
        %v290 = vadd.f32 %v288, %v289
        %v291 = vadd.f32 %v283, %v290
        %292 = vst [vmem:[%s260] sm:$0x1] %v291
        %v293 = vld [vmem:[%s266] sm:$0x1]
        %v294 = vadd.f32 %v281, %v282
        %v295 = vrot.slane %v294, 4
        %v296 = vadd.f32 %v294, %v295
        %v297 = vrot.slane %v296, 2
        %v298 = vadd.f32 %v296, %v297
        %v299 = vrot.slane %v298, 1
        %v300 = vadd.f32 %v298, %v299
        %v301 = vadd.f32 %v293, %v300
        %302 = vst [vmem:[%s266] sm:$0x1] %v301
        %s303 = sand.u32 %s116, 1
        %s304 = scalar_lea.sflag [#allocation4], %s303
        %s305 = sand.u32 %s116, 1
        %s306 = scalar_lea.vmem [#allocation7], %s305
        %s307 = sand.u32 %s144, 1
        %s308 = scalar_lea.sflag [#allocation9], %s307
        %s309 = sand.u32 %s144, 1
        %s310 = scalar_lea.vmem [#allocation8], %s309
        // Predicated region
        $region41: #{tpu_custom_call.1} parent=27 // pred_check
          %p311 = pneg %p126
        $region42: #{tpu_custom_call.1} parent=27 // pred_check_branch
          %313 = sbr.rel (%p311) target = $region44
        $region43: #{tpu_custom_call.1} parent=27 // pred_region
          %s315 = ssub.s32 16, 16
          %316 = vsyncadd %s304, %s315
          %s317 = sadd.s32 %s33, %s32
          %s318 = smul.addr %s317, 16
          %s319 = scalar_lea.hbm %s2, %s318
          %s321 = sshll.u32 %s306, 4
          %s322 = int_to_ptr.vmem [resolvable:$true] %s321
          %324 = dma.vmem_to_hbm [thread:$0]  %s322, 16, %s319, %s304
        $region44: #{tpu_custom_call.1} parent=27 // pred_fallthru
          _
        // Predicated region
        $region45: #{tpu_custom_call.1} parent=27 // pred_check
          %p325 = pneg %p154
        $region46: #{tpu_custom_call.1} parent=27 // pred_check_branch
          %327 = sbr.rel (%p325) target = $region48
        $region47: #{tpu_custom_call.1} parent=27 // pred_region
          %s329 = ssub.s32 16, 16
          %330 = vsyncadd %s308, %s329
          %s331 = sadd.s32 %s33, %s32
          %s332 = smul.addr %s331, 16
          %s333 = scalar_lea.hbm %s3, %s332
          %s335 = sshll.u32 %s310, 4
          %s336 = int_to_ptr.vmem [resolvable:$true] %s335
          %338 = dma.vmem_to_hbm [thread:$0]  %s336, 16, %s333, %s308
        $region48: #{tpu_custom_call.1} parent=27 // pred_fallthru
          _
      $region28: #{tpu_custom_call.1} parent=5 // pred_fallthru
        _
      %p339 = scmp.le.s32.totalorder 2, %s22
      // Predicated region
      $region49: #{tpu_custom_call.1} parent=5 // pred_check
        %p340 = pneg %p339
      $region50: #{tpu_custom_call.1} parent=5 // pred_check_branch
        %342 = sbr.rel (%p340) target = $region52
      $region51: #{tpu_custom_call.1} parent=5 // pred_region
        %s343 = ssub.s32 %s22, 2
        // Predicated region
        $region53: #{tpu_custom_call.1} parent=51 // pred_check
          %p344 = pneg %p132
        $region54: #{tpu_custom_call.1} parent=51 // pred_check_branch
          %346 = sbr.rel (%p344) target = $region56
        $region55: #{tpu_custom_call.1} parent=51 // pred_region
          %s347 = sand.u32 %s117, 1
          %s348 = scalar_lea.sflag [#allocation4], %s347
          %s349 = sand.u32 %s117, 1
          %s350 = scalar_lea.vmem [#allocation7], %s349
          %351 = dma.done %s348, 16
        $region56: #{tpu_custom_call.1} parent=51 // pred_fallthru
          _
        // Predicated region
        $region57: #{tpu_custom_call.1} parent=51 // pred_check
          %p352 = pneg %p160
        $region58: #{tpu_custom_call.1} parent=51 // pred_check_branch
          %354 = sbr.rel (%p352) target = $region60
        $region59: #{tpu_custom_call.1} parent=51 // pred_region
          %s355 = sand.u32 %s145, 1
          %s356 = scalar_lea.sflag [#allocation9], %s355
          %s357 = sand.u32 %s145, 1
          %s358 = scalar_lea.vmem [#allocation8], %s357
          %359 = dma.done %s356, 16
        $region60: #{tpu_custom_call.1} parent=51 // pred_fallthru
          _
      $region52: #{tpu_custom_call.1} parent=5 // pred_fallthru
        _
    $region6: #{tpu_custom_call.1} parent=1 // loop_footer
      %s26 = sadd.s32 1, %s22
    $region7: #{tpu_custom_call.1} parent=1 // loop_footer_branch
      %21 = sbr.rel target = $region3
    $region8: #{tpu_custom_call.1} parent=1 // loop_exit
      _
    %360 = vsyncpa [#allocation3], 1
    %s361 = scalar_lea.sflag [#allocation3], 1
    %362 = vsyncpa %s361, 1
    %363 = vsyncpa [#allocation6], 1
    %s364 = scalar_lea.sflag [#allocation6], 1
    %365 = vsyncpa %s364, 1
    %366 = vsyncpa [#allocation4], 1
    %s367 = scalar_lea.sflag [#allocation4], 1
    %368 = vsyncpa %s367, 1
    %369 = vsyncpa [#allocation9], 1
    %s370 = scalar_lea.sflag [#allocation9], 1
    %371 = vsyncpa %s370, 1

</llo_original>
